<compile_context>
chip_gen: v6e
topology: v6e:2x2x1
jax: 0.10.0
libtpu: 0.0.40
codegen_flags: <defaults>
</compile_context>

<pallas_src>
import functools

import jax
import jax.numpy as jnp
from jax.experimental import pallas as pl
from jax.experimental.pallas import tpu as pltpu


def _round_up(x, m):
    return (x + m - 1) // m * m


def _make_rnn3_kernel(out_sz):
    def kernel(x_ref, h_ref, w1_ref, b1_ref, w2a_ref, w2b_ref, b2_ref, out_ref):
        # ---- stage 1: hidden_new = ReLU(x @ W1 + b1)  (MXU, f32 accumulate) ----
        hn = jnp.dot(x_ref[...].astype(jnp.float32), w1_ref[...],
                     preferred_element_type=jnp.float32)
        hn = jnp.maximum(hn + b1_ref[...], 0.0)                   # (Tm, H) f32

        # ---- stage 2: h2o(cat([hn, h])) == hn @ W2a + h @ W2b + b2 -------------
        # out_sz is tiny (default 1): use VPU multiply + XLU lane-reduce instead
        # of an N=1 MXU matmul.  (For out_sz >= ~128 an MXU dot would be better.)
        h = h_ref[...].astype(jnp.float32)                        # (Tm, H) f32

        cols = []
        for j in range(out_sz):                                   # trace-time loop
            s = hn * w2a_ref[j:j + 1, :] + h * w2b_ref[j:j + 1, :]  # (Tm, H) VPU
            red = jnp.sum(s, axis=-1, keepdims=True)              # (Tm, 1)  XLU
            cols.append(red + b2_ref[j])                          # SMEM scalar bias
        out = cols[0] if out_sz == 1 else jnp.concatenate(cols, axis=-1)
        out_ref[...] = out.astype(out_ref.dtype)

    return kernel


@functools.partial(jax.jit, static_argnames=("tile_m",))
def rnn3_forward(x, hidden, params, *, tile_m=2048):
    """x: (B, S, input_size), hidden: (B, S, hidden_size)
    -> (output (B, S, output_size) f32, hidden unchanged)."""
    B, S, in_sz = x.shape
    H = hidden.shape[-1]
    out_sz = params["w2a"].shape[-1]
    M = B * S

    # Flatten rows; stream x / h at their native dtype (no extra HBM cast pass).
    x2 = x.reshape(M, in_sz)
    h2 = hidden.reshape(M, H)
    w1 = params["w1"].astype(jnp.float32)                   # (in, H)  resident
    b1 = params["b1"].astype(jnp.float32)                   # (1, H)   resident
    w2a_t = params["w2a"].T.astype(jnp.float32)             # (out, H) resident
    w2b_t = params["w2b"].T.astype(jnp.float32)             # (out, H) resident
    b2 = params["b2"].reshape(-1).astype(jnp.float32)       # (out,)   SMEM

    # Row-tile size: multiple of 8 sublanes, no bigger than the (padded) problem.
    tm = min(_round_up(tile_m, 8), _round_up(M, 8))
    grid = (pl.cdiv(M, tm),)

    kernel = _make_rnn3_kernel(out_sz)

    out2 = pl.pallas_call(
        kernel,
        out_shape=jax.ShapeDtypeStruct((M, out_sz), jnp.float32),
        grid=grid,
        in_specs=[
            pl.BlockSpec((tm, in_sz), lambda i: (i, 0)),            # x rows (streamed)
            pl.BlockSpec((tm, H), lambda i: (i, 0)),                # h rows (streamed)
            pl.BlockSpec((in_sz, H), lambda i: (0, 0)),             # W1 (resident)
            pl.BlockSpec((1, H), lambda i: (0, 0)),                 # b1 (resident)
            pl.BlockSpec((out_sz, H), lambda i: (0, 0)),            # W2a^T (resident)
            pl.BlockSpec((out_sz, H), lambda i: (0, 0)),            # W2b^T (resident)
            pl.BlockSpec(memory_space=pltpu.MemorySpace.SMEM),      # b2 scalars
        ],
        out_specs=pl.BlockSpec((tm, out_sz), lambda i: (i, 0)),
        compiler_params=pltpu.CompilerParams(
            dimension_semantics=("parallel",),        # megacore sharding on v7x
            vmem_limit_bytes=32 * 1024 * 1024,        # plenty for ~2.3 MiB of tiles
        ),
    )(x2, h2, w1, b1, w2a_t, w2b_t, b2)

    return out2.reshape(B, S, out_sz), hidden


def init_params(key, input_size=16, hidden_size=128, output_size=1):
    """Deterministic init mimicking nn.Linear default (uniform +/- 1/sqrt(fan_in))."""
    k1, k2, k3, k4 = jax.random.split(key, 4)
    lim1 = 1.0 / jnp.sqrt(jnp.float32(input_size))
    lim2 = 1.0 / jnp.sqrt(jnp.float32(2 * hidden_size))
    w_i2h = jax.random.uniform(k1, (hidden_size, input_size), jnp.float32, -lim1, lim1)
    b_i2h = jax.random.uniform(k2, (hidden_size,), jnp.float32, -lim1, lim1)
    w_h2o = jax.random.uniform(k3, (output_size, 2 * hidden_size), jnp.float32, -lim2, lim2)
    b_h2o = jax.random.uniform(k4, (output_size,), jnp.float32, -lim2, lim2)
    return {
        "w1": w_i2h.T,                                   # (in, H)   == i2h.weight.T
        "b1": b_i2h.reshape(1, hidden_size),             # (1, H)
        "w2a": w_h2o[:, :hidden_size].T,                 # (H, out)  == h2o.weight[:, :H].T
        "w2b": w_h2o[:, hidden_size:].T,                 # (H, out)  == h2o.weight[:, H:].T
        "b2": b_h2o.reshape(1, output_size),             # (1, out)
    }


def _reference(x, hidden, params):
    hn = jax.nn.relu(jnp.einsum("bsi,ih->bsh", x, params["w1"]) + params["b1"][0])
    cat = jnp.concatenate([hn, hidden], axis=2)
    w2 = jnp.concatenate([params["w2a"], params["w2b"]], axis=0)   # (2H, out)
    out = jnp.einsum("bsk,ko->bso", cat, w2) + params["b2"][0]
    return out, hidden


if __name__ == "__main__":
    B, S = 2, 8
    input_size, hidden_size, output_size = 16, 128, 1

    key = jax.random.PRNGKey(0)
    kx, kh, kp = jax.random.split(key, 3)
    x = jax.random.normal(kx, (B, S, input_size), jnp.float32)
    hidden = jax.random.normal(kh, (B, S, hidden_size), jnp.float32)
    params = init_params(kp, input_size, hidden_size, output_size)

    out, hid = rnn3_forward(x, hidden, params)
    out = jax.block_until_ready(out)
    hid = jax.block_until_ready(hid)

    ref_out, ref_hid = _reference(x, hidden, params)
    assert out.shape == (B, S, output_size)
    assert hid.shape == (B, S, hidden_size)
    # Full-f32 streams/weights -> tight tolerance.
    assert jnp.allclose(out, ref_out, atol=1e-4, rtol=1e-4), (
        float(jnp.max(jnp.abs(out - ref_out))))
    assert jnp.allclose(hid, ref_hid)

    print("KERNEL_OK")
</pallas_src>

<mosaic_0001>
module attributes {stable_mosaic.version = 11 : i64} {
  func.func @kernel(%arg0: i32, %arg1: memref<16x16xf32, #tpu.memory_space<vmem>>, %arg2: memref<16x128xf32, #tpu.memory_space<vmem>>, %arg3: memref<16x128xf32, #tpu.memory_space<vmem>>, %arg4: memref<1x128xf32, #tpu.memory_space<vmem>>, %arg5: memref<1x128xf32, #tpu.memory_space<vmem>>, %arg6: memref<1x128xf32, #tpu.memory_space<vmem>>, %arg7: memref<1xf32, #tpu.memory_space<smem>>, %arg8: memref<16x1xf32, #tpu.memory_space<vmem>>) attributes {dimension_semantics = [#tpu.dimension_semantics<parallel>], iteration_bounds = array<i64: 1>, scalar_prefetch = 0 : i64, scratch_operands = 0 : i64, tpu.core_type = #tpu.core_type<tc>, window_params = [{transform_indices = @transform_0, window_bounds = array<i64: 16, 16>}, {transform_indices = @transform_1, window_bounds = array<i64: 16, 128>}, {pipeline_mode = #tpu.pipeline_mode<synchronous>, transform_indices = @transform_2, window_bounds = array<i64: 16, 128>}, {pipeline_mode = #tpu.pipeline_mode<synchronous>, transform_indices = @transform_3, window_bounds = array<i64: 1, 128>}, {pipeline_mode = #tpu.pipeline_mode<synchronous>, transform_indices = @transform_4, window_bounds = array<i64: 1, 128>}, {pipeline_mode = #tpu.pipeline_mode<synchronous>, transform_indices = @transform_5, window_bounds = array<i64: 1, 128>}, {transform_indices = @transform_6, window_bounds = array<i64: 1>}, {transform_indices = @transform_7, window_bounds = array<i64: 16, 1>}]} {
    %c0 = arith.constant 0 : index
    %c0_0 = arith.constant 0 : index
    %0 = vector.load %arg1[%c0, %c0_0] : memref<16x16xf32, #tpu.memory_space<vmem>>, vector<16x16xf32>
    %c0_1 = arith.constant 0 : index
    %c0_2 = arith.constant 0 : index
    %1 = vector.load %arg3[%c0_1, %c0_2] : memref<16x128xf32, #tpu.memory_space<vmem>>, vector<16x128xf32>
    %cst = arith.constant dense<0.000000e+00> : vector<16x128xf32>
    %2 = tpu.matmul %0, %1, %cst {dimension_numbers = #tpu.dot_dimension_numbers<[1], [0], [0], [1], [0, 0, 1, 1], [], []>} : vector<16x16xf32>, vector<16x128xf32>, vector<16x128xf32> -> vector<16x128xf32>
    %c0_3 = arith.constant 0 : index
    %c0_4 = arith.constant 0 : index
    %3 = vector.load %arg4[%c0_3, %c0_4] : memref<1x128xf32, #tpu.memory_space<vmem>>, vector<1x128xf32>
    %4 = vector.broadcast %3 : vector<1x128xf32> to vector<16x128xf32>
    %5 = arith.addf %2, %4 : vector<16x128xf32>
    %cst_5 = arith.constant 0.000000e+00 : f32
    %6 = vector.broadcast %cst_5 : f32 to vector<16x128xf32>
    %7 = arith.maximumf %5, %6 : vector<16x128xf32>
    %c0_6 = arith.constant 0 : index
    %c0_7 = arith.constant 0 : index
    %8 = vector.load %arg2[%c0_6, %c0_7] : memref<16x128xf32, #tpu.memory_space<vmem>>, vector<16x128xf32>
    %c0_8 = arith.constant 0 : index
    %c0_9 = arith.constant 0 : index
    %9 = vector.load %arg5[%c0_8, %c0_9] : memref<1x128xf32, #tpu.memory_space<vmem>>, vector<1x128xf32>
    %10 = vector.broadcast %9 : vector<1x128xf32> to vector<16x128xf32>
    %11 = arith.mulf %7, %10 : vector<16x128xf32>
    %c0_10 = arith.constant 0 : index
    %c0_11 = arith.constant 0 : index
    %12 = vector.load %arg6[%c0_10, %c0_11] : memref<1x128xf32, #tpu.memory_space<vmem>>, vector<1x128xf32>
    %13 = vector.broadcast %12 : vector<1x128xf32> to vector<16x128xf32>
    %14 = arith.mulf %8, %13 : vector<16x128xf32>
    %15 = arith.addf %11, %14 : vector<16x128xf32>
    %cst_12 = arith.constant dense<0.000000e+00> : vector<16xf32>
    %16 = vector.multi_reduction <add>, %15, %cst_12 [1] : vector<16x128xf32> to vector<16xf32>
    %17 = vector.shape_cast %16 : vector<16xf32> to vector<16x1xf32>
    %c0_13 = arith.constant 0 : index
    %18 = memref.load %arg7[%c0_13] : memref<1xf32, #tpu.memory_space<smem>>
    %19 = vector.broadcast %18 : f32 to vector<16x1xf32>
    %20 = arith.addf %17, %19 : vector<16x1xf32>
    %c0_14 = arith.constant 0 : index
    %c0_15 = arith.constant 0 : index
    %21 = vector.load %arg8[%c0_14, %c0_15] : memref<16x1xf32, #tpu.memory_space<vmem>>, vector<16x1xf32>
    tpu.vector_store %arg8[%c0_14, %c0_15], %20 {strides = array<i32>} : memref<16x1xf32, #tpu.memory_space<vmem>>, vector<16x1xf32>,
    return
  }
  func.func @transform_0(%arg0: i32) -> (i32, i32) {
    %c0_i32 = arith.constant 0 : i32
    %c0_i32_0 = arith.constant 0 : i32
    return %arg0, %c0_i32 : i32, i32
  }
  func.func @transform_1(%arg0: i32) -> (i32, i32) {
    %c0_i32 = arith.constant 0 : i32
    %c0_i32_0 = arith.constant 0 : i32
    return %arg0, %c0_i32 : i32, i32
  }
  func.func @transform_2(%arg0: i32) -> (i32, i32) {
    %c0_i32 = arith.constant 0 : i32
    %c0_i32_0 = arith.constant 0 : i32
    %c0_i32_1 = arith.constant 0 : i32
    return %c0_i32, %c0_i32_0 : i32, i32
  }
  func.func @transform_3(%arg0: i32) -> (i32, i32) {
    %c0_i32 = arith.constant 0 : i32
    %c0_i32_0 = arith.constant 0 : i32
    %c0_i32_1 = arith.constant 0 : i32
    return %c0_i32, %c0_i32_0 : i32, i32
  }
  func.func @transform_4(%arg0: i32) -> (i32, i32) {
    %c0_i32 = arith.constant 0 : i32
    %c0_i32_0 = arith.constant 0 : i32
    %c0_i32_1 = arith.constant 0 : i32
    return %c0_i32, %c0_i32_0 : i32, i32
  }
  func.func @transform_5(%arg0: i32) -> (i32, i32) {
    %c0_i32 = arith.constant 0 : i32
    %c0_i32_0 = arith.constant 0 : i32
    %c0_i32_1 = arith.constant 0 : i32
    return %c0_i32, %c0_i32_0 : i32, i32
  }
  func.func @transform_6(%arg0: i32) -> i32 {
    %c0_i32 = arith.constant 0 : i32
    %c0_i32_0 = arith.constant 0 : i32
    return %c0_i32 : i32
  }
  func.func @transform_7(%arg0: i32) -> (i32, i32) {
    %c0_i32 = arith.constant 0 : i32
    %c0_i32_0 = arith.constant 0 : i32
    return %arg0, %c0_i32 : i32, i32
  }
}

</mosaic_0001>

<llo_original>
// kernel: rnn3_forward.1
$region0: #{rnn3_forward.1}
  #allocation0 [shape = 'u32[]', space=smem, size = 0x4, offset = 0x4, fixed_abs, tag = 'smem constant byte address 0x4 - core index']
  #allocation1 [shape = 'u32[144,128]{1,0:T(1,128)}', space=vmem, size = 0x12000, scoped, tag = 'internal scratch']
  #allocation2 [shape = 'f32[1]{0:T(128)S(6)}', space=smem, size = 0x200, scoped, tag = 'scoped memory for rnn3_forward.1']
  %s0 = inlined_call_operand.hbm [shape: f32[16,16], index: 0, kind: input, shape index: {}]
  %s1 = inlined_call_operand.vmem [shape: f32[16,128], index: 1, kind: input, shape index: {}]
  %s2 = inlined_call_operand.hbm [shape: f32[16,128], index: 2, kind: input, shape index: {}]
  %s3 = inlined_call_operand.vmem [shape: f32[1,128], index: 3, kind: input, shape index: {}]
  %s4 = inlined_call_operand.vmem [shape: f32[1,128], index: 4, kind: input, shape index: {}]
  %s5 = inlined_call_operand.vmem [shape: f32[1,128], index: 5, kind: input, shape index: {}]
  %s6 = inlined_call_operand.<no memory space> [shape: f32[1], index: 6, kind: input, shape index: {}]
  %s7 = inlined_call_operand.vmem [shape: f32[16,1], index: 7, kind: output, shape index: {}]
  %s8 = sld [smem:[#allocation0]]
  $region46: #{rnn3_forward.1} parent=0
    _
  %s10 = ssub.s32 1, %s8
  %s11 = scalar_select 0, %s10, %s8
  %12 = sst [smem:[#allocation2]] %s6
  $region1: #{rnn3_forward.1} parent=0
    #allocation3 [shape = 'u8[8192]{0}', space=vmem, size = 0x2000, scoped, tag = 'input window, operand 0, single buffered']
    #allocation4 [shape = 's32[1]{0}', space=sflag, size = 0x4, scoped, tag = 'scoped memory for rnn3_forward.1']
    #allocation5 [shape = 'u8[8192]{0}', space=vmem, size = 0x2000, scoped, tag = 'input window, operand 2, single buffered']
    #allocation6 [shape = 's32[1]{0}', space=sflag, size = 0x4, scoped, tag = 'scoped memory for rnn3_forward.1']
    %13 = vsyncpa [#allocation4], 0
    %14 = vsyncpa [#allocation6], 0
    // Predicated region
    $region2: #{rnn3_forward.1} parent=1 // pred_check
      _
    $region3: #{rnn3_forward.1} parent=1 // pred_check_branch
      %16 = sbr.rel (0) target = $region5
    $region4: #{rnn3_forward.1} parent=1 // pred_region
      %s18 = ssub.s32 256, 256
      %19 = vsyncadd [#allocation4], %s18
      %s20 = sshll.u32 [#allocation3], 4
      %s21 = int_to_ptr.vmem [resolvable:$true] %s20
      %26 = dma.hbm_to_vmem [thread:$0]  %s0, 256, %s21, [#allocation4], 128, 128, 8
    $region5: #{rnn3_forward.1} parent=1 // pred_fallthru
      _
    // Predicated region
    $region6: #{rnn3_forward.1} parent=1 // pred_check
      _
    $region7: #{rnn3_forward.1} parent=1 // pred_check_branch
      %28 = sbr.rel (0) target = $region9
    $region8: #{rnn3_forward.1} parent=1 // pred_region
      _
    $region9: #{rnn3_forward.1} parent=1 // pred_fallthru
      _
    // Predicated region
    $region10: #{rnn3_forward.1} parent=1 // pred_check
      _
    $region11: #{rnn3_forward.1} parent=1 // pred_check_branch
      %30 = sbr.rel (0) target = $region13
    $region12: #{rnn3_forward.1} parent=1 // pred_region
      %s32 = ssub.s32 256, 256
      %33 = vsyncadd [#allocation6], %s32
      %s34 = sshll.u32 [#allocation5], 4
      %s35 = int_to_ptr.vmem [resolvable:$true] %s34
      %40 = dma.hbm_to_vmem [thread:$0]  %s2, 256, %s35, [#allocation6], 128, 128, 8
    $region13: #{rnn3_forward.1} parent=1 // pred_fallthru
      _
    // Predicated region
    $region14: #{rnn3_forward.1} parent=1 // pred_check
      _
    $region15: #{rnn3_forward.1} parent=1 // pred_check_branch
      %42 = sbr.rel (0) target = $region17
    $region16: #{rnn3_forward.1} parent=1 // pred_region
      _
    $region17: #{rnn3_forward.1} parent=1 // pred_fallthru
      _
    // Predicated region
    $region18: #{rnn3_forward.1} parent=1 // pred_check
      _
    $region19: #{rnn3_forward.1} parent=1 // pred_check_branch
      %44 = sbr.rel (0) target = $region21
    $region20: #{rnn3_forward.1} parent=1 // pred_region
      _
    $region21: #{rnn3_forward.1} parent=1 // pred_fallthru
      _
    // Predicated region
    $region22: #{rnn3_forward.1} parent=1 // pred_check
      _
    $region23: #{rnn3_forward.1} parent=1 // pred_check_branch
      %46 = sbr.rel (0) target = $region25
    $region24: #{rnn3_forward.1} parent=1 // pred_region
      _
    $region25: #{rnn3_forward.1} parent=1 // pred_fallthru
      _
    // Predicated region
    $region26: #{rnn3_forward.1} parent=1 // pred_check
      _
    $region27: #{rnn3_forward.1} parent=1 // pred_check_branch
      %48 = sbr.rel (0) target = $region29
    $region28: #{rnn3_forward.1} parent=1 // pred_region
      _
    $region29: #{rnn3_forward.1} parent=1 // pred_fallthru
      _
    // Predicated region
    $region30: #{rnn3_forward.1} parent=1 // pred_check
      _
    $region31: #{rnn3_forward.1} parent=1 // pred_check_branch
      %50 = sbr.rel (0) target = $region33
    $region32: #{rnn3_forward.1} parent=1 // pred_region
      %51 = dma.done [#allocation4], 256
    $region33: #{rnn3_forward.1} parent=1 // pred_fallthru
      _
    // Predicated region
    $region34: #{rnn3_forward.1} parent=1 // pred_check
      _
    $region35: #{rnn3_forward.1} parent=1 // pred_check_branch
      %53 = sbr.rel (0) target = $region37
    $region36: #{rnn3_forward.1} parent=1 // pred_region
      %54 = dma.done [#allocation6], 256
    $region37: #{rnn3_forward.1} parent=1 // pred_fallthru
      _
    %v55 = vld [vmem:[#allocation3] sm:$0xff]
    %v56 = vld [vmem:[#allocation3 + $0x8] sm:$0xff]
    %v57 = vld [vmem:[#allocation5] sm:$0xff]
    %v58 = vld [vmem:[#allocation5 + $0x8] sm:$0xff]
    %v59 = vld [vmem:[%s3] sm:$0x1]
    %v61 = vlaneseq
    %v62 = vshrl.u32 %v61, 7
    %v63 = vsub.s32 0, %v62
    %v64 = vrot.slane %v59, %v63
    %vm66 = vcmask 130048
    %v68 = vsel %vm66, %v55, 0
    %v71 = vsel %vm66, %v56, 0
    %73 = vmatprep.subr.mxu0 0.0
    %74 = vmatpush1.msra.mxu0 0.0
    %75 = vmatprep.subr.mxu0 0.0
    %76 = vmatpush1.msra.mxu0 0.0
    %77 = vmatprep.subr.mxu0 0.0
    %78 = vmatpush1.msra.mxu0 0.0
    %79 = vmatprep.subr.mxu0 0.0
    %80 = vmatpush1.msra.mxu0 0.0
    %81 = vmatprep.subr.mxu0 0.0
    %82 = vmatpush1.msra.mxu0 0.0
    %83 = vmatprep.subr.mxu0 0.0
    %84 = vmatpush1.msra.mxu0 0.0
    %85 = vmatprep.subr.mxu0 0.0
    %86 = vmatpush1.msra.mxu0 0.0
    %87 = vmatprep.subr.mxu0 0.0
    %88 = vmatpush1.msra.mxu0 0.0
    %89 = vmatprep.subr.mxu0 0.0
    %90 = vmatpush1.msra.mxu0 0.0
    %91 = vmatprep.subr.mxu0 0.0
    %92 = vmatpush1.msra.mxu0 0.0
    %93 = vmatprep.subr.mxu0 0.0
    %94 = vmatpush1.msra.mxu0 0.0
    %95 = vmatprep.subr.mxu0 0.0
    %96 = vmatpush1.msra.mxu0 0.0
    %97 = vmatprep.subr.mxu0 0.0
    %98 = vmatpush1.msra.mxu0 0.0
    %99 = vmatprep.subr.mxu0 0.0
    %100 = vmatpush1.msra.mxu0 0.0
    %101 = vmatprep.subr.mxu0 0.0
    %102 = vmatpush1.msra.mxu0 %v58
    %103 = vmatprep.subr.mxu0 0.0
    %104 = vmatpush1.msra.mxu0 %v57
    %105 = vmatprep.subr.mxu0 0.0
    %106 = vmatpush2.msra.mxu0 0.0
    %107 = vmatprep.subr.mxu0 0.0
    %108 = vmatpush2.msra.mxu0 0.0
    %109 = vmatprep.subr.mxu0 0.0
    %110 = vmatpush2.msra.mxu0 0.0
    %111 = vmatprep.subr.mxu0 0.0
    %112 = vmatpush2.msra.mxu0 0.0
    %113 = vmatprep.subr.mxu0 0.0
    %114 = vmatpush2.msra.mxu0 0.0
    %115 = vmatprep.subr.mxu0 0.0
    %116 = vmatpush2.msra.mxu0 0.0
    %117 = vmatprep.subr.mxu0 0.0
    %118 = vmatpush2.msra.mxu0 0.0
    %119 = vmatprep.subr.mxu0 0.0
    %120 = vmatpush2.msra.mxu0 0.0
    %121 = vmatprep.subr.mxu0 0.0
    %122 = vmatpush2.msra.mxu0 0.0
    %123 = vmatprep.subr.mxu0 0.0
    %124 = vmatpush2.msra.mxu0 0.0
    %125 = vmatprep.subr.mxu0 0.0
    %126 = vmatpush2.msra.mxu0 0.0
    %127 = vmatprep.subr.mxu0 0.0
    %128 = vmatpush2.msra.mxu0 0.0
    %129 = vmatprep.subr.mxu0 0.0
    %130 = vmatpush2.msra.mxu0 0.0
    %131 = vmatprep.subr.mxu0 0.0
    %132 = vmatpush2.msra.mxu0 0.0
    %133 = vmatprep.subr.mxu0 0.0
    %134 = vmatpush2.msra.mxu0 0.0
    %135 = vmatprep.subr.mxu0 0.0
    %136 = vmatpush2.msra.mxu0 0.0
    %137 = vmatprep.mubr.f32.mxu0 0.0
    %138 = vmatmul.mubr.f32.gmra.mxu0 %v68
    %v139 = vpop.f32.mrf.mxu0
    %v140 = vadd.f32 %v64, %v139
    %v141 = vpop.f32.mrf.mxu0
    %142 = vmatprep.mubr.f32.mxu0 0.0
    %143 = vmatmul.mubr.f32.gmra.mxu0 %v71
    %v144 = vpop.f32.mrf.mxu0
    %v145 = vadd.f32 %v64, %v144
    %v146 = vpop.f32.mrf.mxu0
    %147 = vdwg.mxu0
    %v148 = vmax.f32 %v140, 0.0
    %v149 = vmax.f32 %v145, 0.0
    %v150 = vld [vmem:[%s1] sm:$0xff]
    %v151 = vld [vmem:[%s1 + $0x8] sm:$0xff]
    %v152 = vld [vmem:[%s4] sm:$0x1]
    %v154 = vlaneseq
    %v155 = vshrl.u32 %v154, 7
    %v156 = vsub.s32 0, %v155
    %v157 = vrot.slane %v152, %v156
    %v159 = vmul.f32 %v148, %v157
    %v160 = vmul.f32 %v149, %v157
    %v161 = vld [vmem:[%s5] sm:$0x1]
    %v163 = vlaneseq
    %v164 = vshrl.u32 %v163, 7
    %v165 = vsub.s32 0, %v164
    %v166 = vrot.slane %v161, %v165
    %v168 = vmul.f32 %v150, %v166
    %v169 = vmul.f32 %v151, %v166
    %v170 = vadd.f32 %v159, %v168
    %v171 = vadd.f32 %v160, %v169
    %172 = vadd.xlane.f32.xlu0 %v170
    %v173 = vpop.xlane.xlu0 %172
    %174 = vadd.xlane.f32.xlu0 %v171
    %v175 = vpop.xlane.xlu0 %174
    %s176 = sld [smem:[#allocation2]]
    %v177 = vstv %s176
    %v178 = vadd.f32 %v173, %v177
    %v179 = vadd.f32 %v175, %v177
    %vm180 = vcmask 7168
    %181 = vst.msk [vmem:[%s7] sm:$0xff] %vm180, %v178
    %182 = vst.msk [vmem:[%s7 + $0x8] sm:$0xff] %vm180, %v179
    // Predicated region
    $region38: #{rnn3_forward.1} parent=1 // pred_check
      _
    $region39: #{rnn3_forward.1} parent=1 // pred_check_branch
      %184 = sbr.rel (0) target = $region41
    $region40: #{rnn3_forward.1} parent=1 // pred_region
      _
    $region41: #{rnn3_forward.1} parent=1 // pred_fallthru
      _
    // Predicated region
    $region42: #{rnn3_forward.1} parent=1 // pred_check
      _
    $region43: #{rnn3_forward.1} parent=1 // pred_check_branch
      %186 = sbr.rel (0) target = $region45
    $region44: #{rnn3_forward.1} parent=1 // pred_region
      _
    $region45: #{rnn3_forward.1} parent=1 // pred_fallthru
      _
    %187 = vsyncpa [#allocation4], 1
    %188 = vsyncpa [#allocation6], 1

</llo_original>
